<compile_context>
chip_gen: v7x
topology: tpu7x:2x2x1
jax: 0.10.0
libtpu: 0.0.40
codegen_flags: <defaults>
</compile_context>

<pallas_src>
import functools

import numpy as np
import jax
import jax.numpy as jnp
from jax.experimental import pallas as pl
from jax.experimental.pallas import tpu as pltpu

# ----------------------------------------------------------------------------
# Fixed module parameters (from ProcessNet.__init__), per atom-type channel (C=4).
# b_i are already scaled: b_i = (1 / b_raw) * 39.44.
# ----------------------------------------------------------------------------
Z_PARAM = np.array([1.0, 3.14, 4.45, 3.83], dtype=np.float32)
SLATER_NORMALIZER = np.array([2.0, 20.17, 48.24, 33.15], dtype=np.float32)
A_PARAM = np.array(
    [[0.489918, 2.31, 3.0485, 12.2126],
     [0.262003, 1.02, 2.2868, 3.1322],
     [0.196767, 1.5886, 1.5463, 2.0125],
     [0.049879, 0.865, 0.867, 1.1663]], dtype=np.float32)          # (4 terms, C)
B_RAW = np.array(
    [[20.6593, 20.8439, 13.2771, 0.0057],
     [7.74039, 10.2075, 5.7011, 9.8933],
     [49.5519, 0.5687, 0.3239, 28.9975],
     [2.20159, 51.6512, 32.9089, 0.5826]], dtype=np.float32)       # (4 terms, C)
B_PARAM = ((1.0 / B_RAW) * 39.44).astype(np.float32)               # (4 terms, C)


# ----------------------------------------------------------------------------
# Small helpers
# ----------------------------------------------------------------------------
def _round_up(x, m):
    return ((int(x) + m - 1) // m) * m


def _cdiv(a, b):
    return -(-int(a) // int(b))


def _bf16_eup_supported():
    """v6e/v7x EUP supports packed bf16 exp; v5e (and older) does not."""
    try:
        kind = jax.devices()[0].device_kind.lower()
    except Exception:
        return False
    return any(t in kind for t in ('v6', 'v7', 'tpu7'))


def _vmem_capacity_bytes():
    try:
        info = pltpu.get_tpu_info()
        cap = int(getattr(info, 'vmem_capacity_bytes', 0))
        if cap > 0:
            return cap
    except Exception:
        pass
    return 64 * 1024 * 1024        # conservative fallback (v7x per-core VMEM)


def _plan_tiles(P, N, Bsz, density_type, tile_p_cap, n_tile_threshold):
    """VMEM-budget-aware tile sizes; P and N are padded by the caller."""
    cap = _vmem_capacity_bytes()
    inter_budget = min(cap // 2, 64 * 1024 * 1024)

    # ---- atom (reduction) axis -------------------------------------------
    if N <= n_tile_threshold:
        tile_n, n_pad = N, N                     # single resident block, no padding
    else:
        tile_n, n_pad = 128, _round_up(N, 128)   # 128-wide tiles (fw lane constraint)
    n_k = n_pad // tile_n

    # ---- grid-point axis (lane-dense) ------------------------------------
    n_live = 8 if density_type == 'Form_Factor' else 6   # live (tile_n, tile_p) f32 temps
    tp_by_vmem = inter_budget // max(1, n_live * tile_n * 4)
    tp_cap = max(128, min(8192, (tp_by_vmem // 128) * 128))
    if tile_p_cap is not None:
        tp_cap = max(128, min(tp_cap, (int(tile_p_cap) // 128) * 128))

    p_pad = _round_up(P, 128)
    n_p = _cdiv(p_pad, tp_cap)
    tile_p = _round_up(_cdiv(p_pad, n_p), 128)
    # v7x has 2 TensorCores: make sure there are >= 2 'parallel' grid steps.
    if Bsz * n_p < 2 and tile_p >= 256:
        n_p = 2
        tile_p = _round_up(_cdiv(p_pad, 2), 128)
    p_pad = tile_p * n_p

    vmem_limit = max(32 * 1024 * 1024,
                     min(int(0.7 * cap), 80 * 1024 * 1024))
    return tile_p, n_p, p_pad, tile_n, n_k, n_pad, vmem_limit


# ----------------------------------------------------------------------------
# Pallas kernel: one grid step per (molecule b, grid-point tile p, atom tile k).
#   pos_ref : (3, TILE_P)             grid xyz, lane-dense
#   par_ref : (1, TILE_N, K)          per-atom [xyz | gathered exponent params]
#   fw_ref  : (1, n_terms*C, TILE_N)  channel weights (normalizers/coefs folded)
#   o_ref   : (1, C, TILE_P)          output slab, accumulated over k
# ----------------------------------------------------------------------------
def _density_kernel(pos_ref, par_ref, fw_ref, o_ref, *, density_type, hyper,
                    num_channels, use_bf16_exp):
    def _exp(a):
        if use_bf16_exp:
            # v6e/v7x EUP packs 2 bf16 elements per op (~2x exp throughput)
            return jnp.exp(a.astype(jnp.bfloat16)).astype(jnp.float32)
        return jnp.exp(a)

    pos = pos_ref[...]                                   # (3, T)
    par = par_ref[0]                                     # (TN, K)
    fw = fw_ref[0]                                       # (n_terms*C, TN)

    # |r - r_a|^2 coordinate-by-coordinate on the VPU: no (N,3,T) intermediate,
    # no cross-sublane reduce.
    # TODO(synk): compute this with a K=5 MXU dot (|x|^2 - 2 x.p + |p|^2 via
    # augmented operands); needs precision=HIGHEST f32 matmuls for an accurate
    # exp argument, so it stays on the VPU here.
    dx = pos[0:1, :] - par[:, 0:1]
    dy = pos[1:2, :] - par[:, 1:2]
    dz = pos[2:3, :] - par[:, 2:3]
    normsq = dx * dx + dy * dy + dz * dz                 # (TN, T)

    if density_type == 'Gaussian':
        # D = exp(-|r - r_a|^2 / sigma); channel reduction on the MXU.
        g = _exp(normsq * jnp.float32(-1.0 / hyper))
        part = jnp.dot(fw, g, preferred_element_type=jnp.float32)           # (C, T)

    elif density_type == 'Slater':
        # Per-atom z gathered in the wrapper: ONE exp + ONE sqrt per tile.
        #   par[:, 3] = -z_atom,  par[:, 4] = 1 for type-0 (H) atoms (prefactor r^0).
        r = jnp.sqrt(normsq)
        e = _exp(par[:, 3:4] * r)
        prefac = par[:, 4:5] + (1.0 - par[:, 4:5]) * r   # H -> 1, else r
        part = jnp.dot(fw, prefac * e, preferred_element_type=jnp.float32)  # (C, T)

    elif density_type == 'Form_Factor':
        # Per-atom b_i gathered in the wrapper: FOUR (TN,T) exps per tile (was 16).
        # Coefficients a_i*sqrt(b_i)/norm_factor are folded into the fw rows.
        part = None
        for i in range(4):
            e = _exp(par[:, 3 + i:4 + i] * normsq)       # par[:, 3+i] = -b_i[atom]
            d = jnp.dot(fw[i * num_channels:(i + 1) * num_channels, :], e,
                        preferred_element_type=jnp.float32)
            part = d if part is None else part + d

    else:
        raise NotImplementedError('Density Type Not Implemented!')

    # Accumulate over the atom-tile ('arbitrary') grid axis directly in the
    # resident f32 output block.
    @pl.when(pl.program_id(2) == 0)
    def _():
        o_ref[...] = jnp.zeros_like(o_ref)

    o_ref[0] = o_ref[0] + part.astype(o_ref.dtype)


# ----------------------------------------------------------------------------
# Wrapper (layout plumbing + per-atom parameter gather; compute lives in the kernel)
# ----------------------------------------------------------------------------
def process_net_forward(pos_grid, x, feature, density_type='Gaussian',
                        hyperparameter=1.0 / 3.0, *, use_bf16_exp='auto',
                        tile_p_cap=None, n_tile_threshold=256,
                        channel_first_output=False):
    pos_grid = jnp.asarray(pos_grid)
    G = pos_grid.shape[0]
    C = pos_grid.shape[3]
    P = G * G * G
    Bsz, N, _ = x.shape

    if use_bf16_exp == 'auto':
        use_bf16_exp = _bf16_eup_supported()

    (tile_p, n_p, p_pad, tile_n, n_k, n_pad, vmem_limit) = _plan_tiles(
        P, N, Bsz, density_type, tile_p_cap, n_tile_threshold)

    xf = jnp.asarray(x, jnp.float32)
    feat = jnp.asarray(feature, jnp.float32)

    # pos_grid is replicated across the type channel: take channel 0, flatten the
    # grid lane-dense -> (3, P), zero-pad P up to a multiple of TILE_P.
    pos_flat = jnp.transpose(
        pos_grid[:, :, :, 0, :, 0, 0].reshape(P, 3)).astype(jnp.float32)
    if p_pad > P:
        pos_flat = jnp.pad(pos_flat, ((0, 0), (0, p_pad - P)))

    # Per-atom parameter gather (assumes one-hot `feature`, as produced by the
    # original preprocessing pipeline) + per-channel constants folded into the
    # feature weights, so the kernel does one channel-independent density and a
    # single MXU channel reduction.
    if density_type == 'Gaussian':
        par = xf                                                         # (B,N,3)
        fw = jnp.transpose(feat, (0, 2, 1))                              # (B,C,N)
        n_terms = 1
    elif density_type == 'Slater':
        types = jnp.argmax(feat, axis=-1)                                # (B,N)
        z_at = jnp.asarray(Z_PARAM)[types]                               # (B,N)
        is_h = (types == 0).astype(jnp.float32)                          # (B,N)
        par = jnp.concatenate([xf, -z_at[..., None], is_h[..., None]], axis=-1)
        fw = jnp.transpose(
            feat * jnp.asarray(SLATER_NORMALIZER)[None, None, :], (0, 2, 1))
        n_terms = 1
    elif density_type == 'Form_Factor':
        types = jnp.argmax(feat, axis=-1)                                # (B,N)
        b_at = jnp.asarray(B_PARAM.T)[types]                             # (B,N,4)
        par = jnp.concatenate([xf, -b_at], axis=-1)                      # (B,N,7)
        coef = ((A_PARAM * np.sqrt(B_PARAM)) /
                float(hyperparameter)).astype(np.float32)                # (4,C)
        fw = jnp.transpose(
            feat[:, :, None, :] * jnp.asarray(coef)[None, None],
            (0, 2, 3, 1)).reshape(Bsz, 4 * C, N)                         # (B,4C,N)
        n_terms = 4
    else:
        raise NotImplementedError('Density Type Not Implemented!')

    if n_pad > N:   # zero-padded atoms contribute nothing (their fw columns are 0)
        par = jnp.pad(par, ((0, 0), (0, n_pad - N), (0, 0)))
        fw = jnp.pad(fw, ((0, 0), (0, 0), (0, n_pad - N)))

    kpar = par.shape[-1]
    kernel = functools.partial(
        _density_kernel, density_type=density_type, hyper=float(hyperparameter),
        num_channels=C, use_bf16_exp=bool(use_bf16_exp))

    out = pl.pallas_call(
        kernel,
        out_shape=jax.ShapeDtypeStruct((Bsz, C, p_pad), jnp.float32),
        grid_spec=pltpu.PrefetchScalarGridSpec(
            num_scalar_prefetch=0,
            grid=(Bsz, n_p, n_k),
            in_specs=[
                pl.BlockSpec((3, tile_p), lambda b, p, k: (0, p)),
                pl.BlockSpec((1, tile_n, kpar), lambda b, p, k: (b, k, 0)),
                pl.BlockSpec((1, n_terms * C, tile_n), lambda b, p, k: (b, 0, k)),
            ],
            out_specs=pl.BlockSpec((1, C, tile_p), lambda b, p, k: (b, 0, p)),
        ),
        compiler_params=pltpu.CompilerParams(
            dimension_semantics=("parallel", "parallel", "arbitrary"),
            vmem_limit_bytes=int(vmem_limit)),
    )(pos_flat, par, fw)

    out = out[:, :, :P]                                  # drop grid padding
    if channel_first_output:
        # Skip the (B,C,P)->(B,P,C) HBM round-trip when downstream can consume
        # channel-first data.
        return out.reshape(Bsz, C, G, G, G)
    return jnp.transpose(out, (0, 2, 1)).reshape(Bsz, G, G, G, C)


# ----------------------------------------------------------------------------
# Pure-JAX reference replicating the exact torch broadcasting semantics
# ----------------------------------------------------------------------------
def process_net_reference(pos_grid, x, feature, density_type='Gaussian',
                          hyperparameter=1.0 / 3.0):
    C = pos_grid.shape[3]
    xp = jnp.transpose(x, (2, 0, 1))          # (3, B, N)
    fp = jnp.transpose(feature, (2, 0, 1))    # (C, B, N)
    diff = pos_grid - xp                      # (G, G, G, C, 3, B, N)
    norm = jnp.sqrt(jnp.sum(diff * diff, axis=-3))  # (G, G, G, C, B, N)

    if density_type == 'Gaussian':
        g = jnp.exp(-norm * norm / hyperparameter) * fp
        return jnp.transpose(jnp.sum(g, axis=-1), (4, 0, 1, 2, 3))
    if density_type == 'Slater':
        z = jnp.asarray(Z_PARAM).reshape(C, 1, 1)
        r = norm.at[:, :, :, 0].set(1.0)
        s = r * jnp.exp(-z * norm) * fp
        s = jnp.transpose(jnp.sum(s, axis=-1), (4, 0, 1, 2, 3))
        return s * jnp.asarray(SLATER_NORMALIZER)
    if density_type == 'Form_Factor':
        ff = jnp.zeros_like(norm)
        for i in range(4):
            a_i = jnp.asarray(A_PARAM[i]).reshape(C, 1, 1)
            b_i = jnp.asarray(B_PARAM[i]).reshape(C, 1, 1)
            ff = ff + a_i * jnp.sqrt(b_i) * jnp.exp(-b_i * norm * norm)
        ff = ff * fp / hyperparameter
        return jnp.transpose(jnp.sum(ff, axis=-1), (4, 0, 1, 2, 3))
    raise NotImplementedError('Density Type Not Implemented!')


if __name__ == "__main__":
    # small, deterministic problem: G=8 grid (P=512), B=2 molecules, N=8 atoms, C=4 types
    G, B, N, C = 8, 2, 8, 4

    # pos_grid exactly as ProcessNet expects: (G, G, G, C, 3, 1, 1)
    lin = jnp.linspace(-2.0, 2.0, G, dtype=jnp.float32)
    gx, gy, gz = jnp.meshgrid(lin, lin, lin, indexing='ij')
    grid_xyz = jnp.stack([gx, gy, gz], axis=-1)                       # (G, G, G, 3)
    pos_grid = jnp.broadcast_to(grid_xyz[:, :, :, None, :, None, None],
                                (G, G, G, C, 3, 1, 1)).astype(jnp.float32)

    key = jax.random.PRNGKey(0)
    kx, kt, kx2, kt2 = jax.random.split(key, 4)
    x = jax.random.uniform(kx, (B, N, 3), jnp.float32, minval=-1.5, maxval=1.5)
    feature = jax.nn.one_hot(jax.random.randint(kt, (B, N), 0, C), C,
                             dtype=jnp.float32)

    cases = [('Gaussian', 1.0 / 3.0), ('Slater', 1.0 / 3.0), ('Form_Factor', 100.0)]

    # Tolerance accommodates the default-precision (bf16-pass) MXU f32 matmuls
    # used for the channel reduction inside the kernel.
    RTOL, ATOL = 1e-2, 2e-3

    # 1) small problem: auto tiling (single P tile) + forced 2-way P tiling
    for dtype_name, hyper in cases:
        ref = jax.block_until_ready(
            process_net_reference(pos_grid, x, feature, dtype_name, hyper))
        caps = (None, 256) if dtype_name == 'Gaussian' else (None,)
        for cap in caps:
            out = jax.block_until_ready(
                process_net_forward(pos_grid, x, feature, dtype_name, hyper,
                                    use_bf16_exp=False, tile_p_cap=cap))
            assert out.shape == (B, G, G, G, C), out.shape
            np.testing.assert_allclose(np.asarray(out), np.asarray(ref),
                                       rtol=RTOL, atol=ATOL)

    # 2) larger atom count -> exercises the N-reduction ('arbitrary') grid axis
    #    with the resident output accumulator and zero-padded atoms.
    N2 = 160
    x2 = jax.random.uniform(kx2, (B, N2, 3), jnp.float32, minval=-1.5, maxval=1.5)
    feature2 = jax.nn.one_hot(jax.random.randint(kt2, (B, N2), 0, C), C,
                              dtype=jnp.float32)
    for dtype_name, hyper in cases:
        ref2 = jax.block_until_ready(
            process_net_reference(pos_grid, x2, feature2, dtype_name, hyper))
        out2 = jax.block_until_ready(
            process_net_forward(pos_grid, x2, feature2, dtype_name, hyper,
                                use_bf16_exp=False, n_tile_threshold=128))
        np.testing.assert_allclose(np.asarray(out2), np.asarray(ref2),
                                   rtol=RTOL, atol=ATOL)

    # 3) bf16 EUP exp fast path (auto-enabled in production on v6e/v7x)
    if _bf16_eup_supported():
        ref = jax.block_until_ready(
            process_net_reference(pos_grid, x, feature, 'Gaussian', 1.0 / 3.0))
        out = jax.block_until_ready(
            process_net_forward(pos_grid, x, feature, 'Gaussian', 1.0 / 3.0,
                                use_bf16_exp=True))
        np.testing.assert_allclose(np.asarray(out), np.asarray(ref),
                                   rtol=5e-2, atol=5e-3)

    print("KERNEL_OK")
</pallas_src>

<mosaic_0001>
module attributes {stable_mosaic.version = 11 : i64} {
  func.func @_density_kernel(%arg0: i32, %arg1: i32, %arg2: i32, %arg3: memref<3x512xf32, #tpu.memory_space<vmem>>, %arg4: memref<1x8x3xf32, #tpu.memory_space<vmem>>, %arg5: memref<1x4x8xf32, #tpu.memory_space<vmem>>, %arg6: memref<1x4x512xf32, #tpu.memory_space<vmem>>) attributes {dimension_semantics = [#tpu.dimension_semantics<parallel>, #tpu.dimension_semantics<parallel>, #tpu.dimension_semantics<arbitrary>], iteration_bounds = array<i64: 2, 1, 1>, scalar_prefetch = 0 : i64, scratch_operands = 0 : i64, tpu.core_type = #tpu.core_type<tc>, window_params = [{transform_indices = @transform_0, window_bounds = array<i64: 3, 512>}, {transform_indices = @transform_1, window_bounds = array<i64: 1, 8, 3>}, {transform_indices = @transform_2, window_bounds = array<i64: 1, 4, 8>}, {transform_indices = @transform_3, window_bounds = array<i64: 1, 4, 512>}]} {
    %c0 = arith.constant 0 : index
    %c0_0 = arith.constant 0 : index
    %0 = vector.load %arg3[%c0, %c0_0] : memref<3x512xf32, #tpu.memory_space<vmem>>, vector<3x512xf32>
    %c0_1 = arith.constant 0 : index
    %c0_2 = arith.constant 0 : index
    %c0_3 = arith.constant 0 : index
    %1 = vector.load %arg4[%c0_1, %c0_2, %c0_3] : memref<1x8x3xf32, #tpu.memory_space<vmem>>, vector<1x8x3xf32>
    %2 = vector.shape_cast %1 : vector<1x8x3xf32> to vector<8x3xf32>
    %c0_4 = arith.constant 0 : index
    %c0_5 = arith.constant 0 : index
    %c0_6 = arith.constant 0 : index
    %3 = vector.load %arg5[%c0_4, %c0_5, %c0_6] : memref<1x4x8xf32, #tpu.memory_space<vmem>>, vector<1x4x8xf32>
    %4 = vector.shape_cast %3 : vector<1x4x8xf32> to vector<4x8xf32>
    %5 = vector.extract_strided_slice %0 {offsets = [0, 0], sizes = [1, 512], strides = [1, 1]} : vector<3x512xf32> to vector<1x512xf32>
    %6 = vector.extract_strided_slice %2 {offsets = [0, 0], sizes = [8, 1], strides = [1, 1]} : vector<8x3xf32> to vector<8x1xf32>
    %7 = vector.broadcast %5 : vector<1x512xf32> to vector<8x512xf32>
    %8 = vector.broadcast %6 : vector<8x1xf32> to vector<8x512xf32>
    %9 = arith.subf %7, %8 : vector<8x512xf32>
    %10 = vector.extract_strided_slice %0 {offsets = [1, 0], sizes = [1, 512], strides = [1, 1]} : vector<3x512xf32> to vector<1x512xf32>
    %11 = vector.extract_strided_slice %2 {offsets = [0, 1], sizes = [8, 1], strides = [1, 1]} : vector<8x3xf32> to vector<8x1xf32>
    %12 = vector.broadcast %10 : vector<1x512xf32> to vector<8x512xf32>
    %13 = vector.broadcast %11 : vector<8x1xf32> to vector<8x512xf32>
    %14 = arith.subf %12, %13 : vector<8x512xf32>
    %15 = vector.extract_strided_slice %0 {offsets = [2, 0], sizes = [1, 512], strides = [1, 1]} : vector<3x512xf32> to vector<1x512xf32>
    %16 = vector.extract_strided_slice %2 {offsets = [0, 2], sizes = [8, 1], strides = [1, 1]} : vector<8x3xf32> to vector<8x1xf32>
    %17 = vector.broadcast %15 : vector<1x512xf32> to vector<8x512xf32>
    %18 = vector.broadcast %16 : vector<8x1xf32> to vector<8x512xf32>
    %19 = arith.subf %17, %18 : vector<8x512xf32>
    %20 = arith.mulf %9, %9 : vector<8x512xf32>
    %21 = arith.mulf %14, %14 : vector<8x512xf32>
    %22 = arith.addf %20, %21 : vector<8x512xf32>
    %23 = arith.mulf %19, %19 : vector<8x512xf32>
    %24 = arith.addf %22, %23 : vector<8x512xf32>
    %cst = arith.constant -3.000000e+00 : f32
    %25 = vector.broadcast %cst : f32 to vector<8x512xf32>
    %26 = arith.mulf %24, %25 : vector<8x512xf32>
    %27 = math.exp %26 : vector<8x512xf32>
    %cst_7 = arith.constant dense<0.000000e+00> : vector<4x512xf32>
    %28 = tpu.matmul %4, %27, %cst_7 {dimension_numbers = #tpu.dot_dimension_numbers<[1], [0], [0], [1], [0, 0, 1, 1], [], []>} : vector<4x8xf32>, vector<8x512xf32>, vector<4x512xf32> -> vector<4x512xf32>
    %c0_i32 = arith.constant 0 : i32
    %29 = arith.cmpi eq, %arg2, %c0_i32 : i32
    %30 = arith.extui %29 : i1 to i32
    %c0_i32_8 = arith.constant 0 : i32
    %31 = arith.cmpi ne, %30, %c0_i32_8 : i32
    scf.if %31 {
      %cst_15 = arith.constant 0.000000e+00 : f32
      %38 = vector.broadcast %cst_15 : f32 to vector<1x4x512xf32>
      %c0_16 = arith.constant 0 : index
      %c0_17 = arith.constant 0 : index
      %c0_18 = arith.constant 0 : index
      %39 = vector.load %arg6[%c0_16, %c0_17, %c0_18] : memref<1x4x512xf32, #tpu.memory_space<vmem>>, vector<1x4x512xf32>
      tpu.vector_store %arg6[%c0_16, %c0_17, %c0_18], %38 {strides = array<i32>} : memref<1x4x512xf32, #tpu.memory_space<vmem>>, vector<1x4x512xf32>,
    } else {
    }
    %c0_9 = arith.constant 0 : index
    %c0_10 = arith.constant 0 : index
    %c0_11 = arith.constant 0 : index
    %32 = vector.load %arg6[%c0_9, %c0_10, %c0_11] : memref<1x4x512xf32, #tpu.memory_space<vmem>>, vector<1x4x512xf32>
    %33 = vector.shape_cast %32 : vector<1x4x512xf32> to vector<4x512xf32>
    %34 = arith.addf %33, %28 : vector<4x512xf32>
    %c0_12 = arith.constant 0 : index
    %c0_13 = arith.constant 0 : index
    %c0_14 = arith.constant 0 : index
    %35 = vector.load %arg6[%c0_12, %c0_13, %c0_14] : memref<1x4x512xf32, #tpu.memory_space<vmem>>, vector<1x4x512xf32>
    %36 = vector.shape_cast %35 : vector<1x4x512xf32> to vector<4x512xf32>
    %37 = vector.shape_cast %34 : vector<4x512xf32> to vector<1x4x512xf32>
    tpu.vector_store %arg6[%c0_12, %c0_13, %c0_14], %37 {strides = array<i32>} : memref<1x4x512xf32, #tpu.memory_space<vmem>>, vector<1x4x512xf32>,
    return
  }
  func.func @transform_0(%arg0: i32, %arg1: i32, %arg2: i32) -> (i32, i32) {
    %c0_i32 = arith.constant 0 : i32
    %c0_i32_0 = arith.constant 0 : i32
    return %c0_i32, %arg1 : i32, i32
  }
  func.func @transform_1(%arg0: i32, %arg1: i32, %arg2: i32) -> (i32, i32, i32) {
    %c0_i32 = arith.constant 0 : i32
    %c0_i32_0 = arith.constant 0 : i32
    return %arg0, %arg2, %c0_i32 : i32, i32, i32
  }
  func.func @transform_2(%arg0: i32, %arg1: i32, %arg2: i32) -> (i32, i32, i32) {
    %c0_i32 = arith.constant 0 : i32
    %c0_i32_0 = arith.constant 0 : i32
    return %arg0, %c0_i32, %arg2 : i32, i32, i32
  }
  func.func @transform_3(%arg0: i32, %arg1: i32, %arg2: i32) -> (i32, i32, i32) {
    %c0_i32 = arith.constant 0 : i32
    %c0_i32_0 = arith.constant 0 : i32
    return %arg0, %c0_i32, %arg1 : i32, i32, i32
  }
}

</mosaic_0001>

<llo_original>
// kernel: tpu_custom_call.1
$region0: #{tpu_custom_call.1}
  #allocation0 [shape = 'u32[]', space=smem, size = 0x4, offset = 0x4, fixed_abs, tag = 'smem constant byte address 0x4 - core index']
  #allocation1 [shape = 'u32[144,128]{1,0:T(1,128)}', space=vmem, size = 0x12000, scoped, tag = 'internal scratch']
  %s0 = inlined_call_operand.vmem [shape: f32[3,512], index: 0, kind: input, shape index: {}]
  %s1 = inlined_call_operand.vmem [shape: f32[2,8,3], index: 1, kind: input, shape index: {}]
  %s2 = inlined_call_operand.vmem [shape: f32[2,4,8], index: 2, kind: input, shape index: {}]
  %s3 = inlined_call_operand.hbm [shape: f32[2,4,512], index: 3, kind: output, shape index: {}]
  %s4 = sld [smem:[#allocation0]]
  $region49: #{tpu_custom_call.1} parent=0
    _
  %s6 = ssub.s32 1, %s4
  %s7 = scalar_select 0, %s6, %s4
  $region1: #{tpu_custom_call.1} parent=0
    #allocation2 [shape = 'u8[16384]{0}', space=vmem, size = 0x4000, scoped, tag = 'output window, operand 0']
    #allocation3 [shape = 's32[2]{0}', space=sflag, size = 0x8, scoped, tag = 'scoped memory for tpu_custom_call.1']
    %8 = vsyncpa [#allocation3], 0
    %s9 = scalar_lea.sflag [#allocation3], 1
    %10 = vsyncpa %s9, 0
    loop: start=0, step=1, limit=4
    $region2: #{tpu_custom_call.1} parent=1 // loop_pre_header
      _
    $region3: #{tpu_custom_call.1} parent=1 // loop_header
      %s12 = sphi 0, %s16
      %p13 = scmp.ge.s32.totalorder %s12, 4
      %s19 = sphi 0, %s38
      %s20 = sphi 0, %s34
      %s21 = sphi 0, %s30
      %s22 = sphi 0, %s19
      %s23 = sphi 0, %s20
      %s24 = sphi 0, %s21
      %s25 = sphi 0, %s22
      %s26 = sphi 0, %s23
      %s27 = sphi 0, %s24
      %s41 = sphi 0, %s43
      %s44 = sphi 0, %s41
      %s45 = sphi 0, %s44
      %s61 = sphi 0, %s45
      %s69 = sphi 0, %s71
      %s72 = sphi 0, %s69
      %s73 = sphi 0, %s72
      %s89 = sphi 0, %s73
      %s97 = sphi 0, %s99
      %s100 = sphi 0, %s97
      %s101 = sphi 0, %s100
      %s117 = sphi 0, %s101
      %s125 = sphi 0, %s127
      %s128 = sphi 0, %s125
      %s129 = sphi 0, %s128
      %s145 = sphi 0, %s129
    $region4: #{tpu_custom_call.1} parent=1 // loop_header_branch
      %15 = sbr.rel (%p13) target = $region8
    $region5: #{tpu_custom_call.1} parent=1 // loop_body
      %s17 = ssub.s32 %s12, 1
      %s18 = ssub.s32 %s12, 2
      %s28 = sadd.s32 1, %s21
      %p29 = scmp.ge.s32.totalorder %s28, 1
      %s30 = scalar_select %p29, 0, %s28
      %s31 = sadd.s32 1, %s20
      %s32 = scalar_select %p29, %s31, %s20
      %p33 = scmp.ge.s32.totalorder %s32, 1
      %s34 = scalar_select %p33, 0, %s32
      %s35 = sadd.s32 1, %s19
      %s36 = scalar_select %p33, %s35, %s19
      %p37 = scmp.ge.s32.totalorder %s36, 2
      %s38 = scalar_select %p37, 0, %s36
      %s39 = ssub.s32 %s20, %s34
      %p40 = scmp.eq.s32.totalorder %s39, 0
      %s42 = sadd.s32 %s41, 1
      %s43 = scalar_select %p40, %s41, %s42
      %p46 = pneg %p40
      %p47 = scmp.eq.s32.totalorder %s12, 1
      %p48 = por %p46, %p47
      %p49 = scmp.ne.s32.totalorder %s41, %s44
      %p50 = scmp.eq.s32.totalorder %s12, 0
      %p51 = por %p49, %p50
      %p52 = scmp.ne.s32.totalorder %s41, %s44
      %p53 = scmp.eq.s32.totalorder %s17, 1
      %p54 = por %p52, %p53
      %p55 = scmp.ne.s32.totalorder %s44, %s45
      %p56 = scmp.eq.s32.totalorder %s17, 0
      %p57 = por %p55, %p56
      %p58 = scmp.ne.s32.totalorder %s44, %s45
      %p59 = scmp.eq.s32.totalorder %s18, 1
      %p60 = por %p58, %p59
      %p62 = scmp.ne.s32.totalorder %s45, %s61
      %p63 = scmp.eq.s32.totalorder %s18, 0
      %p64 = por %p62, %p63
      %s65 = ssub.s32 %s19, %s38
      %s66 = ssub.s32 %s21, %s30
      %s67 = sor.u32 %s65, %s66
      %p68 = scmp.eq.s32.totalorder %s67, 0
      %s70 = sadd.s32 %s69, 1
      %s71 = scalar_select %p68, %s69, %s70
      %p74 = pneg %p68
      %p75 = scmp.eq.s32.totalorder %s12, 1
      %p76 = por %p74, %p75
      %p77 = scmp.ne.s32.totalorder %s69, %s72
      %p78 = scmp.eq.s32.totalorder %s12, 0
      %p79 = por %p77, %p78
      %p80 = scmp.ne.s32.totalorder %s69, %s72
      %p81 = scmp.eq.s32.totalorder %s17, 1
      %p82 = por %p80, %p81
      %p83 = scmp.ne.s32.totalorder %s72, %s73
      %p84 = scmp.eq.s32.totalorder %s17, 0
      %p85 = por %p83, %p84
      %p86 = scmp.ne.s32.totalorder %s72, %s73
      %p87 = scmp.eq.s32.totalorder %s18, 1
      %p88 = por %p86, %p87
      %p90 = scmp.ne.s32.totalorder %s73, %s89
      %p91 = scmp.eq.s32.totalorder %s18, 0
      %p92 = por %p90, %p91
      %s93 = ssub.s32 %s19, %s38
      %s94 = ssub.s32 %s21, %s30
      %s95 = sor.u32 %s93, %s94
      %p96 = scmp.eq.s32.totalorder %s95, 0
      %s98 = sadd.s32 %s97, 1
      %s99 = scalar_select %p96, %s97, %s98
      %p102 = pneg %p96
      %p103 = scmp.eq.s32.totalorder %s12, 1
      %p104 = por %p102, %p103
      %p105 = scmp.ne.s32.totalorder %s97, %s100
      %p106 = scmp.eq.s32.totalorder %s12, 0
      %p107 = por %p105, %p106
      %p108 = scmp.ne.s32.totalorder %s97, %s100
      %p109 = scmp.eq.s32.totalorder %s17, 1
      %p110 = por %p108, %p109
      %p111 = scmp.ne.s32.totalorder %s100, %s101
      %p112 = scmp.eq.s32.totalorder %s17, 0
      %p113 = por %p111, %p112
      %p114 = scmp.ne.s32.totalorder %s100, %s101
      %p115 = scmp.eq.s32.totalorder %s18, 1
      %p116 = por %p114, %p115
      %p118 = scmp.ne.s32.totalorder %s101, %s117
      %p119 = scmp.eq.s32.totalorder %s18, 0
      %p120 = por %p118, %p119
      %s121 = ssub.s32 %s19, %s38
      %s122 = ssub.s32 %s20, %s34
      %s123 = sor.u32 %s121, %s122
      %p124 = scmp.eq.s32.totalorder %s123, 0
      %s126 = sadd.s32 %s125, 1
      %s127 = scalar_select %p124, %s125, %s126
      %p130 = pneg %p124
      %p131 = scmp.eq.s32.totalorder %s12, 1
      %p132 = por %p130, %p131
      %p133 = scmp.ne.s32.totalorder %s125, %s128
      %p134 = scmp.eq.s32.totalorder %s12, 0
      %p135 = por %p133, %p134
      %p136 = scmp.ne.s32.totalorder %s125, %s128
      %p137 = scmp.eq.s32.totalorder %s17, 1
      %p138 = por %p136, %p137
      %p139 = scmp.ne.s32.totalorder %s128, %s129
      %p140 = scmp.eq.s32.totalorder %s17, 0
      %p141 = por %p139, %p140
      %p142 = scmp.ne.s32.totalorder %s128, %s129
      %p143 = scmp.eq.s32.totalorder %s18, 1
      %p144 = por %p142, %p143
      %p146 = scmp.ne.s32.totalorder %s129, %s145
      %p147 = scmp.eq.s32.totalorder %s18, 0
      %p148 = por %p146, %p147
      %p149 = scmp.le.s32.totalorder 1, %s12
      %p150 = scmp.lt.s32.totalorder %s12, 3
      %p151 = pnand %p149, %p150
      %p152 = pneg %p151
      // Predicated region
      $region9: #{tpu_custom_call.1} parent=5 // pred_check
        _
      $region10: #{tpu_custom_call.1} parent=5 // pred_check_branch
        %154 = sbr.rel (%p151) target = $region12
      $region11: #{tpu_custom_call.1} parent=5 // pred_region
        %s155 = ssub.s32 %s12, 1
        // Predicated region
        $region13: #{tpu_custom_call.1} parent=11 // pred_check
          %p156 = pneg %p57
        $region14: #{tpu_custom_call.1} parent=11 // pred_check_branch
          %158 = sbr.rel (%p156) target = $region16
        $region15: #{tpu_custom_call.1} parent=11 // pred_region
          %s159 = smul.u32 4, %s23
          %p160 = scmp.lt.s32.totalorder %s159, 3
          %s161 = scalar_select %p160, %s159, 3
          %s162 = smul.addr %s161, 4
          %s163 = scalar_lea.vmem %s0, %s162
          %s164 = smul.u32 4, %s23
        $region16: #{tpu_custom_call.1} parent=11 // pred_fallthru
          _
      $region12: #{tpu_custom_call.1} parent=5 // pred_fallthru
        _
      %p165 = scmp.lt.s32.totalorder %s12, 2
      // Predicated region
      $region17: #{tpu_custom_call.1} parent=5 // pred_check
        %p166 = pneg %p165
      $region18: #{tpu_custom_call.1} parent=5 // pred_check_branch
        %168 = sbr.rel (%p166) target = $region20
      $region19: #{tpu_custom_call.1} parent=5 // pred_region
        // Predicated region
        $region21: #{tpu_custom_call.1} parent=19 // pred_check
          %p169 = pneg %p79
        $region22: #{tpu_custom_call.1} parent=19 // pred_check_branch
          %171 = sbr.rel (%p169) target = $region24
        $region23: #{tpu_custom_call.1} parent=19 // pred_region
          %p172 = scmp.lt.s32.totalorder %s19, 1
          %s173 = scalar_select %p172, %s19, 1
          %p174 = scmp.lt.s32.totalorder %s21, 0
          %s175 = scalar_select %p174, %s21, 0
          %s176 = sadd.s32 %s175, %s173
          %s177 = smul.addr %s176, 8
          %s178 = scalar_lea.vmem %s1, %s177
        $region24: #{tpu_custom_call.1} parent=19 // pred_fallthru
          _
        // Predicated region
        $region25: #{tpu_custom_call.1} parent=19 // pred_check
          %p179 = pneg %p107
        $region26: #{tpu_custom_call.1} parent=19 // pred_check_branch
          %181 = sbr.rel (%p179) target = $region28
        $region27: #{tpu_custom_call.1} parent=19 // pred_region
          %p182 = scmp.lt.s32.totalorder %s19, 1
          %s183 = scalar_select %p182, %s19, 1
          %p184 = scmp.lt.s32.totalorder %s21, 0
          %s185 = scalar_select %p184, %s21, 0
          %s186 = sadd.s32 %s185, %s183
          %s187 = smul.addr %s186, 4
          %s188 = scalar_lea.vmem %s2, %s187
        $region28: #{tpu_custom_call.1} parent=19 // pred_fallthru
          _
      $region20: #{tpu_custom_call.1} parent=5 // pred_fallthru
        _
      %p189 = scmp.le.s32.totalorder 1, %s12
      %p190 = scmp.lt.s32.totalorder %s12, 3
      %p191 = pnand %p189, %p190
      %p192 = pneg %p191
      // Predicated region
      $region29: #{tpu_custom_call.1} parent=5 // pred_check
        _
      $region30: #{tpu_custom_call.1} parent=5 // pred_check_branch
        %194 = sbr.rel (%p191) target = $region32
      $region31: #{tpu_custom_call.1} parent=5 // pred_region
        %s195 = ssub.s32 %s12, 1
        %s196 = smul.u32 4, %s23
        %p197 = scmp.lt.s32.totalorder %s196, 3
        %s198 = scalar_select %p197, %s196, 3
        %s199 = smul.addr %s198, 4
        %s200 = scalar_lea.vmem %s0, %s199
        %p201 = pneg %p57
        %p202 = pneg %p54
        %p203 = scmp.lt.s32.totalorder %s22, 1
        %s204 = scalar_select %p203, %s22, 1
        %p205 = scmp.lt.s32.totalorder %s24, 0
        %s206 = scalar_select %p205, %s24, 0
        %s207 = sadd.s32 %s206, %s204
        %s208 = smul.addr %s207, 8
        %s209 = scalar_lea.vmem %s1, %s208
        %p210 = pneg %p85
        %p211 = pneg %p82
        %p212 = scmp.lt.s32.totalorder %s22, 1
        %s213 = scalar_select %p212, %s22, 1
        %p214 = scmp.lt.s32.totalorder %s24, 0
        %s215 = scalar_select %p214, %s24, 0
        %s216 = sadd.s32 %s215, %s213
        %s217 = smul.addr %s216, 4
        %s218 = scalar_lea.vmem %s2, %s217
        %p219 = pneg %p113
        %p220 = pneg %p110
        %p221 = pneg %p141
        %p222 = pneg %p138
        %s223 = sand.u32 %s128, 1
        %s224 = scalar_lea.sflag [#allocation3], %s223
        %s225 = sand.u32 %s128, 1
        %s226 = smul.addr %s225, 16
        %s227 = scalar_lea.vmem [#allocation2], %s226
        %s228 = smul.u32 4, %s23
        %p229 = scmp.lt.s32.totalorder %s228, 3
        %s230 = scalar_select %p229, %s228, 3
        %s231 = smul.addr %s230, 4
        %s232 = scalar_lea.vmem %s0, %s231
        %s233 = smul.u32 4, %s23
        %p234 = scmp.lt.s32.totalorder %s22, 1
        %s235 = scalar_select %p234, %s22, 1
        %p236 = scmp.lt.s32.totalorder %s24, 0
        %s237 = scalar_select %p236, %s24, 0
        %s238 = sadd.s32 %s237, %s235
        %s239 = smul.addr %s238, 8
        %s240 = scalar_lea.vmem %s1, %s239
        %p241 = scmp.lt.s32.totalorder %s22, 1
        %s242 = scalar_select %p241, %s22, 1
        %p243 = scmp.lt.s32.totalorder %s24, 0
        %s244 = scalar_select %p243, %s24, 0
        %s245 = sadd.s32 %s244, %s242
        %s246 = smul.addr %s245, 4
        %s247 = scalar_lea.vmem %s2, %s246
        %s248 = smul.u32 4, %s23
        %v249 = vld [vmem:[%s232] sm:$0x77]
        %v250 = vld [vmem:[%s232 + $0x8] sm:$0x77]
        %v251 = vld [vmem:[%s240] sm:$0xff]
        %v252 = vld [vmem:[%s247] sm:$0xf]
        %v255 = vlaneseq
        %v256 = vshrl.u32 %v255, 7
        %v257 = vsub.s32 0, %v256
        %v258 = vrot.slane %v249, %v257
        %v259 = vlaneseq
        %v260 = vshrl.u32 %v259, 7
        %v261 = vsub.s32 4, %v260
        %v262 = vrot.slane %v249, %v261
        %v263 = vlaneseq
        %v264 = vshrl.u32 %v263, 7
        %v265 = vsub.s32 0, %v264
        %v266 = vrot.slane %v250, %v265
        %v267 = vlaneseq
        %v268 = vshrl.u32 %v267, 7
        %v269 = vsub.s32 4, %v268
        %v270 = vrot.slane %v250, %v269
        %v275 = vlaneseq
        %v276 = vshrl.u32 %v275, 7
        %v277 = vsub.s32 0, %v276
        %v278 = vrot.slane %v258, %v277
        %v279 = vlaneseq
        %v280 = vshrl.u32 %v279, 7
        %v281 = vsub.s32 0, %v280
        %v282 = vrot.slane %v262, %v281
        %v283 = vlaneseq
        %v284 = vshrl.u32 %v283, 7
        %v285 = vsub.s32 0, %v284
        %v286 = vrot.slane %v266, %v285
        %v287 = vlaneseq
        %v288 = vshrl.u32 %v287, 7
        %v289 = vsub.s32 0, %v288
        %v290 = vrot.slane %v270, %v289
        %292 = vset.pattern.permute.xlu0 0
        %293 = vperm.xlu0 %292, %v251
        %v294 = vpop.permute.xlu0 %293
        %v296 = vsub.f32 %v278, %v294
        %v297 = vsub.f32 %v282, %v294
        %v298 = vsub.f32 %v286, %v294
        %v299 = vsub.f32 %v290, %v294
        %v300 = vlaneseq
        %v301 = vshrl.u32 %v300, 7
        %v302 = vsub.s32 1, %v301
        %v303 = vrot.slane %v249, %v302
        %v304 = vlaneseq
        %v305 = vshrl.u32 %v304, 7
        %v306 = vsub.s32 5, %v305
        %v307 = vrot.slane %v249, %v306
        %v308 = vlaneseq
        %v309 = vshrl.u32 %v308, 7
        %v310 = vsub.s32 1, %v309
        %v311 = vrot.slane %v250, %v310
        %v312 = vlaneseq
        %v313 = vshrl.u32 %v312, 7
        %v314 = vsub.s32 5, %v313
        %v315 = vrot.slane %v250, %v314
        %v320 = vlaneseq
        %v321 = vshrl.u32 %v320, 7
        %v322 = vsub.s32 1, %v321
        %v323 = vrot.slane %v303, %v322
        %v324 = vlaneseq
        %v325 = vshrl.u32 %v324, 7
        %v326 = vsub.s32 1, %v325
        %v327 = vrot.slane %v307, %v326
        %v328 = vlaneseq
        %v329 = vshrl.u32 %v328, 7
        %v330 = vsub.s32 1, %v329
        %v331 = vrot.slane %v311, %v330
        %v332 = vlaneseq
        %v333 = vshrl.u32 %v332, 7
        %v334 = vsub.s32 1, %v333
        %v335 = vrot.slane %v315, %v334
        %336 = vset.pattern.permute.xlu0 1
        %337 = vperm.xlu0 %336, %v251
        %v338 = vpop.permute.xlu0 %337
        %v340 = vsub.f32 %v323, %v338
        %v341 = vsub.f32 %v327, %v338
        %v342 = vsub.f32 %v331, %v338
        %v343 = vsub.f32 %v335, %v338
        %v344 = vlaneseq
        %v345 = vshrl.u32 %v344, 7
        %v346 = vsub.s32 2, %v345
        %v347 = vrot.slane %v249, %v346
        %v348 = vlaneseq
        %v349 = vshrl.u32 %v348, 7
        %v350 = vsub.s32 6, %v349
        %v351 = vrot.slane %v249, %v350
        %v352 = vlaneseq
        %v353 = vshrl.u32 %v352, 7
        %v354 = vsub.s32 2, %v353
        %v355 = vrot.slane %v250, %v354
        %v356 = vlaneseq
        %v357 = vshrl.u32 %v356, 7
        %v358 = vsub.s32 6, %v357
        %v359 = vrot.slane %v250, %v358
        %v364 = vlaneseq
        %v365 = vshrl.u32 %v364, 7
        %v366 = vsub.s32 2, %v365
        %v367 = vrot.slane %v347, %v366
        %v368 = vlaneseq
        %v369 = vshrl.u32 %v368, 7
        %v370 = vsub.s32 2, %v369
        %v371 = vrot.slane %v351, %v370
        %v372 = vlaneseq
        %v373 = vshrl.u32 %v372, 7
        %v374 = vsub.s32 2, %v373
        %v375 = vrot.slane %v355, %v374
        %v376 = vlaneseq
        %v377 = vshrl.u32 %v376, 7
        %v378 = vsub.s32 2, %v377
        %v379 = vrot.slane %v359, %v378
        %380 = vset.pattern.permute.xlu0 2
        %381 = vperm.xlu0 %380, %v251
        %v382 = vpop.permute.xlu0 %381
        %v384 = vsub.f32 %v367, %v382
        %v385 = vsub.f32 %v371, %v382
        %v386 = vsub.f32 %v375, %v382
        %v387 = vsub.f32 %v379, %v382
        %v388 = vmul.f32 %v296, %v296
        %v389 = vmul.f32 %v297, %v297
        %v390 = vmul.f32 %v298, %v298
        %v391 = vmul.f32 %v299, %v299
        %v392 = vmul.f32 %v340, %v340
        %v393 = vmul.f32 %v341, %v341
        %v394 = vmul.f32 %v342, %v342
        %v395 = vmul.f32 %v343, %v343
        %v396 = vadd.f32 %v388, %v392
        %v397 = vadd.f32 %v389, %v393
        %v398 = vadd.f32 %v390, %v394
        %v399 = vadd.f32 %v391, %v395
        %v400 = vmul.f32 %v384, %v384
        %v401 = vmul.f32 %v385, %v385
        %v402 = vmul.f32 %v386, %v386
        %v403 = vmul.f32 %v387, %v387
        %v404 = vadd.f32 %v396, %v400
        %v405 = vadd.f32 %v397, %v401
        %v406 = vadd.f32 %v398, %v402
        %v407 = vadd.f32 %v399, %v403
        %v408 = vmul.f32 %v404, -3.0
        %v409 = vmul.f32 %v405, -3.0
        %v410 = vmul.f32 %v406, -3.0
        %v411 = vmul.f32 %v407, -3.0
        %v412 = vmul.f32 %v408, 1.442695
        %v413 = vpow.pop %v412
        %v414 = vmul.f32 %v409, 1.442695
        %v415 = vpow.pop %v414
        %v416 = vmul.f32 %v410, 1.442695
        %v417 = vpow.pop %v416
        %v418 = vmul.f32 %v411, 1.442695
        %v419 = vpow.pop %v418
        %vm420 = vcmask 64512
        %v422 = vsel %vm420, %v252, 0
        %424 = vmatprep.subr.mxu0 %v415
        %425 = vmatpush1.msra.mxu0 %v413
        %426 = vmatprep.subr.mxu0 0.0
        %427 = vmatpush1.msra.mxu0 0.0
        %428 = vmatprep.subr.mxu0 0.0
        %429 = vmatpush1.msra.mxu0 0.0
        %430 = vmatprep.subr.mxu0 0.0
        %431 = vmatpush1.msra.mxu0 0.0
        %432 = vmatprep.subr.mxu0 0.0
        %433 = vmatpush1.msra.mxu0 0.0
        %434 = vmatprep.subr.mxu0 0.0
        %435 = vmatpush1.msra.mxu0 0.0
        %436 = vmatprep.subr.mxu0 0.0
        %437 = vmatpush1.msra.mxu0 0.0
        %438 = vmatprep.subr.mxu0 0.0
        %439 = vmatpush1.msra.mxu0 0.0
        %440 = vmatprep.subr.mxu0 0.0
        %441 = vmatpush1.msra.mxu0 0.0
        %442 = vmatprep.subr.mxu0 0.0
        %443 = vmatpush1.msra.mxu0 0.0
        %444 = vmatprep.subr.mxu0 0.0
        %445 = vmatpush1.msra.mxu0 0.0
        %446 = vmatprep.subr.mxu0 0.0
        %447 = vmatpush1.msra.mxu0 0.0
        %448 = vmatprep.subr.mxu0 0.0
        %449 = vmatpush1.msra.mxu0 0.0
        %450 = vmatprep.subr.mxu0 0.0
        %451 = vmatpush1.msra.mxu0 0.0
        %452 = vmatprep.subr.mxu0 0.0
        %453 = vmatpush1.msra.mxu0 0.0
        %454 = vmatprep.subr.mxu0 0.0
        %455 = vmatpush1.msra.mxu0 0.0
        %456 = vmatprep.subr.mxu0 0.0
        %457 = vmatpush1.msra.mxu0 0.0
        %458 = vmatprep.subr.mxu0 0.0
        %459 = vmatpush1.msra.mxu0 0.0
        %460 = vmatprep.subr.mxu0 0.0
        %461 = vmatpush1.msra.mxu0 0.0
        %462 = vmatprep.subr.mxu0 0.0
        %463 = vmatpush1.msra.mxu0 0.0
        %464 = vmatprep.subr.mxu0 0.0
        %465 = vmatpush1.msra.mxu0 0.0
        %466 = vmatprep.subr.mxu0 0.0
        %467 = vmatpush1.msra.mxu0 0.0
        %468 = vmatprep.subr.mxu0 0.0
        %469 = vmatpush1.msra.mxu0 0.0
        %470 = vmatprep.subr.mxu0 0.0
        %471 = vmatpush1.msra.mxu0 0.0
        %472 = vmatprep.subr.mxu0 0.0
        %473 = vmatpush1.msra.mxu0 0.0
        %474 = vmatprep.subr.mxu0 0.0
        %475 = vmatpush1.msra.mxu0 0.0
        %476 = vmatprep.subr.mxu0 0.0
        %477 = vmatpush1.msra.mxu0 0.0
        %478 = vmatprep.subr.mxu0 0.0
        %479 = vmatpush1.msra.mxu0 0.0
        %480 = vmatprep.subr.mxu0 0.0
        %481 = vmatpush1.msra.mxu0 0.0
        %482 = vmatprep.subr.mxu0 0.0
        %483 = vmatpush1.msra.mxu0 0.0
        %484 = vmatprep.subr.mxu0 0.0
        %485 = vmatpush1.msra.mxu0 0.0
        %486 = vmatprep.subr.mxu0 0.0
        %487 = vmatpush1.msra.mxu0 0.0
        %488 = vmatprep.mubr.f32.mxu0 0.0
        %489 = vmatmul.mubr.f32.gmra.mrb[0].mxu0 %v422
        %v490 = vpop.f32.mrb[0].mxu0
        %v491 = vadd.f32 0.0, %v490
        %v492 = vpop.f32.mrb[0].mxu0
        %v493 = vadd.f32 0.0, %v492
        %494 = vdwg.mxu0
        %495 = vmatprep.subr.mxu0 %v419
        %496 = vmatpush1.msra.mxu0 %v417
        %497 = vmatprep.subr.mxu0 0.0
        %498 = vmatpush1.msra.mxu0 0.0
        %499 = vmatprep.subr.mxu0 0.0
        %500 = vmatpush1.msra.mxu0 0.0
        %501 = vmatprep.subr.mxu0 0.0
        %502 = vmatpush1.msra.mxu0 0.0
        %503 = vmatprep.subr.mxu0 0.0
        %504 = vmatpush1.msra.mxu0 0.0
        %505 = vmatprep.subr.mxu0 0.0
        %506 = vmatpush1.msra.mxu0 0.0
        %507 = vmatprep.subr.mxu0 0.0
        %508 = vmatpush1.msra.mxu0 0.0
        %509 = vmatprep.subr.mxu0 0.0
        %510 = vmatpush1.msra.mxu0 0.0
        %511 = vmatprep.subr.mxu0 0.0
        %512 = vmatpush1.msra.mxu0 0.0
        %513 = vmatprep.subr.mxu0 0.0
        %514 = vmatpush1.msra.mxu0 0.0
        %515 = vmatprep.subr.mxu0 0.0
        %516 = vmatpush1.msra.mxu0 0.0
        %517 = vmatprep.subr.mxu0 0.0
        %518 = vmatpush1.msra.mxu0 0.0
        %519 = vmatprep.subr.mxu0 0.0
        %520 = vmatpush1.msra.mxu0 0.0
        %521 = vmatprep.subr.mxu0 0.0
        %522 = vmatpush1.msra.mxu0 0.0
        %523 = vmatprep.subr.mxu0 0.0
        %524 = vmatpush1.msra.mxu0 0.0
        %525 = vmatprep.subr.mxu0 0.0
        %526 = vmatpush1.msra.mxu0 0.0
        %527 = vmatprep.subr.mxu0 0.0
        %528 = vmatpush1.msra.mxu0 0.0
        %529 = vmatprep.subr.mxu0 0.0
        %530 = vmatpush1.msra.mxu0 0.0
        %531 = vmatprep.subr.mxu0 0.0
        %532 = vmatpush1.msra.mxu0 0.0
        %533 = vmatprep.subr.mxu0 0.0
        %534 = vmatpush1.msra.mxu0 0.0
        %535 = vmatprep.subr.mxu0 0.0
        %536 = vmatpush1.msra.mxu0 0.0
        %537 = vmatprep.subr.mxu0 0.0
        %538 = vmatpush1.msra.mxu0 0.0
        %539 = vmatprep.subr.mxu0 0.0
        %540 = vmatpush1.msra.mxu0 0.0
        %541 = vmatprep.subr.mxu0 0.0
        %542 = vmatpush1.msra.mxu0 0.0
        %543 = vmatprep.subr.mxu0 0.0
        %544 = vmatpush1.msra.mxu0 0.0
        %545 = vmatprep.subr.mxu0 0.0
        %546 = vmatpush1.msra.mxu0 0.0
        %547 = vmatprep.subr.mxu0 0.0
        %548 = vmatpush1.msra.mxu0 0.0
        %549 = vmatprep.subr.mxu0 0.0
        %550 = vmatpush1.msra.mxu0 0.0
        %551 = vmatprep.subr.mxu0 0.0
        %552 = vmatpush1.msra.mxu0 0.0
        %553 = vmatprep.subr.mxu0 0.0
        %554 = vmatpush1.msra.mxu0 0.0
        %555 = vmatprep.subr.mxu0 0.0
        %556 = vmatpush1.msra.mxu0 0.0
        %557 = vmatprep.subr.mxu0 0.0
        %558 = vmatpush1.msra.mxu0 0.0
        %559 = vmatprep.mubr.f32.mxu0 0.0
        %560 = vmatmul.mubr.f32.gmra.mrb[0].mxu0 %v422
        %v561 = vpop.f32.mrb[0].mxu0
        %v562 = vadd.f32 0.0, %v561
        %v563 = vpop.f32.mrb[0].mxu0
        %v564 = vadd.f32 0.0, %v563
        %565 = vdwg.mxu0
        %p566 = scmp.eq.s32.totalorder %s24, 0
        // Predicated region
        $region33: #{tpu_custom_call.1} parent=31 // pred_check
          %p567 = pneg %p566
        $region34: #{tpu_custom_call.1} parent=31 // pred_check_branch
          %569 = sbr.rel (%p567) target = $region36
        $region35: #{tpu_custom_call.1} parent=31 // pred_region
          %570 = vst [vmem:[%s227] sm:$0xff] 0.0
          %571 = vst [vmem:[%s227 + $0x8] sm:$0xff] 0.0
        $region36: #{tpu_custom_call.1} parent=31 // pred_fallthru
          _
        %v572 = vld [vmem:[%s227] sm:$0xff]
        %v573 = vld [vmem:[%s227 + $0x8] sm:$0xff]
        %v578 = vcombine.low %v491, %v493
        %v579 = vcombine.low %v562, %v564
        %v582 = vadd.f32 %v572, %v578
        %v583 = vadd.f32 %v573, %v579
        %584 = vst [vmem:[%s227] sm:$0xff] %v582
        %585 = vst [vmem:[%s227 + $0x8] sm:$0xff] %v583
        %s586 = sand.u32 %s128, 1
        %s587 = scalar_lea.sflag [#allocation3], %s586
        %s588 = sand.u32 %s128, 1
        %s589 = smul.addr %s588, 16
        %s590 = scalar_lea.vmem [#allocation2], %s589
        // Predicated region
        $region37: #{tpu_custom_call.1} parent=31 // pred_check
          %p591 = pneg %p138
        $region38: #{tpu_custom_call.1} parent=31 // pred_check_branch
          %593 = sbr.rel (%p591) target = $region40
        $region39: #{tpu_custom_call.1} parent=31 // pred_region
          %s594 = smul.u32 4, %s23
          %s596 = ssub.s32 256, 256
          %597 = vsyncadd %s587, %s596
          %s598 = smul.addr %s22, 4
          %s599 = sadd.s32 %s594, %s598
          %s600 = smul.addr %s599, 64
          %s601 = scalar_lea.hbm %s3, %s600
          %s603 = sshll.u32 %s590, 4
          %s604 = int_to_ptr.vmem [resolvable:$true] %s603
          %606 = dma.vmem_to_hbm [thread:$0]  %s604, 256, %s601, %s587
        $region40: #{tpu_custom_call.1} parent=31 // pred_fallthru
          _
      $region32: #{tpu_custom_call.1} parent=5 // pred_fallthru
        _
      %p607 = scmp.le.s32.totalorder 2, %s12
      // Predicated region
      $region41: #{tpu_custom_call.1} parent=5 // pred_check
        %p608 = pneg %p607
      $region42: #{tpu_custom_call.1} parent=5 // pred_check_branch
        %610 = sbr.rel (%p608) target = $region44
      $region43: #{tpu_custom_call.1} parent=5 // pred_region
        %s611 = ssub.s32 %s12, 2
        // Predicated region
        $region45: #{tpu_custom_call.1} parent=43 // pred_check
          %p612 = pneg %p144
        $region46: #{tpu_custom_call.1} parent=43 // pred_check_branch
          %614 = sbr.rel (%p612) target = $region48
        $region47: #{tpu_custom_call.1} parent=43 // pred_region
          %s615 = sand.u32 %s129, 1
          %s616 = scalar_lea.sflag [#allocation3], %s615
          %s617 = sand.u32 %s129, 1
          %s618 = smul.addr %s617, 16
          %s619 = scalar_lea.vmem [#allocation2], %s618
          %620 = dma.done %s616, 256
        $region48: #{tpu_custom_call.1} parent=43 // pred_fallthru
          _
      $region44: #{tpu_custom_call.1} parent=5 // pred_fallthru
        _
    $region6: #{tpu_custom_call.1} parent=1 // loop_footer
      %s16 = sadd.s32 1, %s12
    $region7: #{tpu_custom_call.1} parent=1 // loop_footer_branch
      %11 = sbr.rel target = $region3
    $region8: #{tpu_custom_call.1} parent=1 // loop_exit
      _
    %621 = vsyncpa [#allocation3], 1
    %s622 = scalar_lea.sflag [#allocation3], 1
    %623 = vsyncpa %s622, 1

</llo_original>
